<compile_context>
chip_gen: v7x
topology: tpu7x:2x2x1
jax: 0.10.0
libtpu: 0.0.40
codegen_flags: <defaults>
</compile_context>

<pallas_src>
import functools

import jax
import jax.numpy as jnp
from jax.experimental import pallas as pl
from jax.experimental.pallas import tpu as pltpu


def _frn_kernel(x_ref, p_ref, o_ref, *, eps, inv_hw):
    # x_ref: (TR, HWp)   p_ref: (TR, 3) = [gamma, beta, tau]   o_ref: (TR, HWp)
    x = x_ref[...].astype(jnp.float32)
    # Sum of squares over the (possibly zero-padded) lane axis, divided by the
    # TRUE spatial size -> padding zeros never affect nu2.
    nu2 = jnp.sum(x * x, axis=-1, keepdims=True) * inv_hw        # (TR, 1)
    y = x * jax.lax.rsqrt(nu2 + eps)                             # (TR, HWp)
    p = p_ref[...].astype(jnp.float32)                           # (TR, 3)
    g = p[:, 0:1]
    b = p[:, 1:2]
    t = p[:, 2:3]
    o_ref[...] = jnp.maximum(g * y + b, t).astype(o_ref.dtype)


def _vmem_capacity_bytes():
    try:
        info = pltpu.get_tpu_info()
        return int(info.vmem_capacity_bytes)
    except Exception:
        # Conservative fallback: v7x physical VMEM per TensorCore.
        return 64 * 1024 * 1024


def _choose_row_tile(rows, hw_p, itemsize, vmem_budget, sub):
    # Pipeline double-buffers the x input block and the output block:
    #   2 * (2 * row_tile * hw_p * itemsize)  <=  vmem_budget
    cap = vmem_budget // (4 * hw_p * itemsize)
    cap = max(sub, (cap // sub) * sub)
    # Keep at least 2 grid steps so the 'parallel' axis can shard across the
    # two v7x TensorCores (no-op on v5e/v6e).
    if rows >= 2 * sub:
        half = ((rows // 2) // sub) * sub
        cap = min(cap, max(sub, half))
    rows_ceil = ((rows + sub - 1) // sub) * sub
    cap = min(cap, rows_ceil)
    # Prefer the largest tile that exactly divides rows (avoids row padding).
    t = cap
    while t >= sub:
        if rows % t == 0:
            return t
        t -= sub
    return cap  # no divisor; caller pads rows up to a multiple of cap


def frn_pallas(x, tau, gamma, beta, eps=1e-6, row_tile=None):
    """FRN forward.

    x:     [B, C, H, W]
    tau:   [1, C, 1, 1]
    gamma: [1, C, 1, 1]
    beta:  [1, C, 1, 1]
    """
    B, C, H, W = x.shape
    rows = B * C
    hw = H * W
    itemsize = x.dtype.itemsize

    # Lane-dense last dim (multiple of 128); sublane multiple per dtype packing
    # (8 rows for f32, 16 for bf16, 32 for int8/fp8).
    hw_p = ((hw + 127) // 128) * 128
    sub = max(8, 32 // itemsize)

    vmem_cap = _vmem_capacity_bytes()
    vmem_budget = int(0.4 * vmem_cap)  # headroom for params/scratch/compiler

    if row_tile is None:
        row_tile = _choose_row_tile(rows, hw_p, itemsize, vmem_budget, sub)
    row_tile = max(sub, (row_tile // sub) * sub)

    rows_p = ((rows + row_tile - 1) // row_tile) * row_tile
    grid = (rows_p // row_tile,)

    # --- prepare inputs -------------------------------------------------
    x2d = x.reshape(rows, hw)
    pad_r = rows_p - rows
    pad_l = hw_p - hw
    if pad_r or pad_l:
        x2d = jnp.pad(x2d, ((0, pad_r), (0, pad_l)))

    # One packed per-row param array: columns = [gamma, beta, tau].
    gamma_r = jnp.tile(gamma.reshape(C, 1).astype(jnp.float32), (B, 1))
    beta_r = jnp.tile(beta.reshape(C, 1).astype(jnp.float32), (B, 1))
    tau_r = jnp.tile(tau.reshape(C, 1).astype(jnp.float32), (B, 1))
    params = jnp.concatenate([gamma_r, beta_r, tau_r], axis=1)  # (rows, 3)
    if pad_r:
        params = jnp.pad(params, ((0, pad_r), (0, 0)))

    # --- VMEM limit sized to the (double-buffered) blocks ----------------
    needed = (4 * row_tile * hw_p * itemsize          # x + out, double-buffered
              + 4 * row_tile * 128 * 4                # param block (lane padded)
              + (2 << 20))                            # slack
    vmem_limit = min(int(0.85 * vmem_cap), max(needed, 16 << 20))

    cost = pl.CostEstimate(
        flops=6 * rows * hw,
        transcendentals=rows,
        bytes_accessed=2 * rows * hw * itemsize + 3 * rows * 4,
    )

    kernel = functools.partial(_frn_kernel, eps=float(eps), inv_hw=1.0 / float(hw))

    out2d = pl.pallas_call(
        kernel,
        out_shape=jax.ShapeDtypeStruct((rows_p, hw_p), x.dtype),
        grid_spec=pltpu.PrefetchScalarGridSpec(
            num_scalar_prefetch=0,
            grid=grid,
            in_specs=[
                pl.BlockSpec((row_tile, hw_p), lambda i: (i, 0)),
                pl.BlockSpec((row_tile, 3), lambda i: (i, 0)),
            ],
            out_specs=pl.BlockSpec((row_tile, hw_p), lambda i: (i, 0)),
        ),
        compiler_params=pltpu.CompilerParams(
            dimension_semantics=("parallel",),
            vmem_limit_bytes=vmem_limit,
        ),
        cost_estimate=cost,
    )(x2d, params)

    if pad_r or pad_l:
        out2d = out2d[:rows, :hw]
    return out2d.reshape(B, C, H, W)


def frn_reference(x, tau, gamma, beta, eps=1e-6):
    x = x.astype(jnp.float32)
    nu2 = jnp.mean(x * x, axis=(2, 3), keepdims=True)
    y = x * jax.lax.rsqrt(nu2 + eps)
    return jnp.maximum(gamma * y + beta, tau)


def _run_case(key, B, C, H, W):
    kx, kt, kg, kb = jax.random.split(key, 4)
    x = jax.random.normal(kx, (B, C, H, W), dtype=jnp.float32)
    # Module defaults (tau=0, gamma=1, beta=0) + small perturbations so every
    # term of the forward is exercised.
    tau = jnp.zeros((1, C, 1, 1), jnp.float32) + 0.05 * jax.random.normal(kt, (1, C, 1, 1))
    gamma = jnp.ones((1, C, 1, 1), jnp.float32) + 0.05 * jax.random.normal(kg, (1, C, 1, 1))
    beta = jnp.zeros((1, C, 1, 1), jnp.float32) + 0.05 * jax.random.normal(kb, (1, C, 1, 1))

    out = jax.block_until_ready(frn_pallas(x, tau, gamma, beta))
    ref = frn_reference(x, tau, gamma, beta)
    assert out.shape == (B, C, H, W)
    assert jnp.allclose(out, ref, atol=1e-5, rtol=1e-5), (
        f"max abs err {jnp.max(jnp.abs(out - ref))} at shape {(B, C, H, W)}"
    )


if __name__ == "__main__":
    key = jax.random.PRNGKey(0)
    k1, k2 = jax.random.split(key)

    # Primary small case (aligned: H*W = 256 is lane-dense).
    _run_case(k1, B=2, C=4, H=16, W=16)
    # Non-aligned case (H*W = 49, B*C = 6): exercises lane/row padding paths.
    _run_case(k2, B=2, C=3, H=7, W=7)

    print("KERNEL_OK")
</pallas_src>

<mosaic_0001>
module attributes {stable_mosaic.version = 11 : i64} {
  func.func @_frn_kernel(%arg0: i32, %arg1: memref<8x256xf32, #tpu.memory_space<vmem>>, %arg2: memref<8x3xf32, #tpu.memory_space<vmem>>, %arg3: memref<8x256xf32, #tpu.memory_space<vmem>>) attributes {dimension_semantics = [#tpu.dimension_semantics<parallel>], iteration_bounds = array<i64: 1>, scalar_prefetch = 0 : i64, scratch_operands = 0 : i64, tpu.core_type = #tpu.core_type<tc>, window_params = [{transform_indices = @transform_0, window_bounds = array<i64: 8, 256>}, {transform_indices = @transform_1, window_bounds = array<i64: 8, 3>}, {transform_indices = @transform_2, window_bounds = array<i64: 8, 256>}]} {
    %c0 = arith.constant 0 : index
    %c0_0 = arith.constant 0 : index
    %0 = vector.load %arg1[%c0, %c0_0] : memref<8x256xf32, #tpu.memory_space<vmem>>, vector<8x256xf32>
    %1 = arith.mulf %0, %0 : vector<8x256xf32>
    %cst = arith.constant dense<0.000000e+00> : vector<8xf32>
    %2 = vector.multi_reduction <add>, %1, %cst [1] : vector<8x256xf32> to vector<8xf32>
    %3 = vector.shape_cast %2 : vector<8xf32> to vector<8x1xf32>
    %cst_1 = arith.constant 3.906250e-03 : f32
    %4 = vector.broadcast %cst_1 : f32 to vector<8x1xf32>
    %5 = arith.mulf %3, %4 : vector<8x1xf32>
    %cst_2 = arith.constant 9.99999997E-7 : f32
    %6 = vector.broadcast %cst_2 : f32 to vector<8x1xf32>
    %7 = arith.addf %5, %6 : vector<8x1xf32>
    %8 = math.rsqrt %7 : vector<8x1xf32>
    %9 = vector.broadcast %8 : vector<8x1xf32> to vector<8x256xf32>
    %10 = arith.mulf %0, %9 : vector<8x256xf32>
    %c0_3 = arith.constant 0 : index
    %c0_4 = arith.constant 0 : index
    %11 = vector.load %arg2[%c0_3, %c0_4] : memref<8x3xf32, #tpu.memory_space<vmem>>, vector<8x3xf32>
    %12 = vector.extract_strided_slice %11 {offsets = [0, 0], sizes = [8, 1], strides = [1, 1]} : vector<8x3xf32> to vector<8x1xf32>
    %13 = vector.extract_strided_slice %11 {offsets = [0, 1], sizes = [8, 1], strides = [1, 1]} : vector<8x3xf32> to vector<8x1xf32>
    %14 = vector.extract_strided_slice %11 {offsets = [0, 2], sizes = [8, 1], strides = [1, 1]} : vector<8x3xf32> to vector<8x1xf32>
    %15 = vector.broadcast %12 : vector<8x1xf32> to vector<8x256xf32>
    %16 = arith.mulf %15, %10 : vector<8x256xf32>
    %17 = vector.broadcast %13 : vector<8x1xf32> to vector<8x256xf32>
    %18 = arith.addf %16, %17 : vector<8x256xf32>
    %19 = vector.broadcast %14 : vector<8x1xf32> to vector<8x256xf32>
    %20 = arith.maximumf %18, %19 : vector<8x256xf32>
    %c0_5 = arith.constant 0 : index
    %c0_6 = arith.constant 0 : index
    %21 = vector.load %arg3[%c0_5, %c0_6] : memref<8x256xf32, #tpu.memory_space<vmem>>, vector<8x256xf32>
    tpu.vector_store %arg3[%c0_5, %c0_6], %20 {strides = array<i32>} : memref<8x256xf32, #tpu.memory_space<vmem>>, vector<8x256xf32>,
    return
  }
  func.func @transform_0(%arg0: i32) -> (i32, i32) {
    %c0_i32 = arith.constant 0 : i32
    %c0_i32_0 = arith.constant 0 : i32
    return %arg0, %c0_i32 : i32, i32
  }
  func.func @transform_1(%arg0: i32) -> (i32, i32) {
    %c0_i32 = arith.constant 0 : i32
    %c0_i32_0 = arith.constant 0 : i32
    return %arg0, %c0_i32 : i32, i32
  }
  func.func @transform_2(%arg0: i32) -> (i32, i32) {
    %c0_i32 = arith.constant 0 : i32
    %c0_i32_0 = arith.constant 0 : i32
    return %arg0, %c0_i32 : i32, i32
  }
}

</mosaic_0001>

<llo_original>
// kernel: tpu_custom_call.1
$region0: #{tpu_custom_call.1}
  #allocation0 [shape = 'u32[]', space=smem, size = 0x4, offset = 0x4, fixed_abs, tag = 'smem constant byte address 0x4 - core index']
  #allocation1 [shape = 'u32[144,128]{1,0:T(1,128)}', space=vmem, size = 0x12000, scoped, tag = 'internal scratch']
  %s0 = inlined_call_operand.hbm [shape: f32[8,256], index: 0, kind: input, shape index: {}]
  %s1 = inlined_call_operand.vmem [shape: f32[8,3], index: 1, kind: input, shape index: {}]
  %s2 = inlined_call_operand.hbm [shape: f32[8,256], index: 2, kind: output, shape index: {}]
  %s3 = sld [smem:[#allocation0]]
  $region22: #{tpu_custom_call.1} parent=0
    _
  %s5 = ssub.s32 1, %s3
  %s6 = scalar_select 0, %s5, %s3
  $region1: #{tpu_custom_call.1} parent=0
    #allocation2 [shape = 'u8[8192]{0}', space=vmem, size = 0x2000, scoped, tag = 'input window, operand 0, single buffered']
    #allocation3 [shape = 's32[1]{0}', space=sflag, size = 0x4, scoped, tag = 'scoped memory for tpu_custom_call.1']
    #allocation4 [shape = 's32[1]{0}', space=sflag, size = 0x4, scoped, tag = 'scoped memory for tpu_custom_call.1']
    #allocation5 [shape = 'u8[8192]{0}', space=vmem, size = 0x2000, scoped, tag = 'output window, operand 0, single buffered']
    %7 = vsyncpa [#allocation3], 0
    %8 = vsyncpa [#allocation4], 0
    // Predicated region
    $region2: #{tpu_custom_call.1} parent=1 // pred_check
      _
    $region3: #{tpu_custom_call.1} parent=1 // pred_check_branch
      %10 = sbr.rel (0) target = $region5
    $region4: #{tpu_custom_call.1} parent=1 // pred_region
      %s12 = ssub.s32 256, 256
      %13 = vsyncadd [#allocation3], %s12
      %s15 = sshll.u32 [#allocation2], 4
      %s16 = int_to_ptr.vmem [resolvable:$true] %s15
      %18 = dma.hbm_to_vmem [thread:$0]  %s0, 256, %s16, [#allocation3]
    $region5: #{tpu_custom_call.1} parent=1 // pred_fallthru
      _
    // Predicated region
    $region6: #{tpu_custom_call.1} parent=1 // pred_check
      _
    $region7: #{tpu_custom_call.1} parent=1 // pred_check_branch
      %20 = sbr.rel (0) target = $region9
    $region8: #{tpu_custom_call.1} parent=1 // pred_region
      _
    $region9: #{tpu_custom_call.1} parent=1 // pred_fallthru
      _
    // Predicated region
    $region10: #{tpu_custom_call.1} parent=1 // pred_check
      _
    $region11: #{tpu_custom_call.1} parent=1 // pred_check_branch
      %22 = sbr.rel (0) target = $region13
    $region12: #{tpu_custom_call.1} parent=1 // pred_region
      %23 = dma.done [#allocation3], 256
    $region13: #{tpu_custom_call.1} parent=1 // pred_fallthru
      _
    %v24 = vld [vmem:[#allocation2] sm:$0xff]
    %v25 = vld [vmem:[#allocation2 + $0x8] sm:$0xff]
    %v26 = vmul.f32 %v24, %v24
    %v27 = vmul.f32 %v25, %v25
    %v28 = vadd.f32 %v26, %v27
    %29 = vadd.xlane.f32.xlu0 %v28
    %v30 = vpop.xlane.xlu0 %29
    %v31 = vmul.f32 %v30, 0.00390625
    %v32 = vadd.f32 %v31, 1e-06
    %v33 = vrsqrt.pop %v32
    %v34 = vmul.f32 %v24, %v33
    %v35 = vmul.f32 %v25, %v33
    %v36 = vld [vmem:[%s1] sm:$0xff]
    %38 = vset.pattern.permute.xlu0 0
    %39 = vperm.xlu0 %38, %v36
    %v40 = vpop.permute.xlu0 %39
    %v42 = vmul.f32 %v40, %v34
    %v43 = vmul.f32 %v40, %v35
    %44 = vset.pattern.permute.xlu0 1
    %45 = vperm.xlu0 %44, %v36
    %v46 = vpop.permute.xlu0 %45
    %v48 = vadd.f32 %v42, %v46
    %v49 = vadd.f32 %v43, %v46
    %50 = vset.pattern.permute.xlu0 2
    %51 = vperm.xlu0 %50, %v36
    %v52 = vpop.permute.xlu0 %51
    %v54 = vmax.f32 %v48, %v52
    %v55 = vmax.f32 %v49, %v52
    %56 = vst [vmem:[#allocation5] sm:$0xff] %v54
    %57 = vst [vmem:[#allocation5 + $0x8] sm:$0xff] %v55
    // Predicated region
    $region14: #{tpu_custom_call.1} parent=1 // pred_check
      _
    $region15: #{tpu_custom_call.1} parent=1 // pred_check_branch
      %59 = sbr.rel (0) target = $region17
    $region16: #{tpu_custom_call.1} parent=1 // pred_region
      %s61 = ssub.s32 256, 256
      %62 = vsyncadd [#allocation4], %s61
      %s64 = sshll.u32 [#allocation5], 4
      %s65 = int_to_ptr.vmem [resolvable:$true] %s64
      %67 = dma.vmem_to_hbm [thread:$0]  %s65, 256, %s2, [#allocation4]
    $region17: #{tpu_custom_call.1} parent=1 // pred_fallthru
      _
    // Predicated region
    $region18: #{tpu_custom_call.1} parent=1 // pred_check
      _
    $region19: #{tpu_custom_call.1} parent=1 // pred_check_branch
      %69 = sbr.rel (0) target = $region21
    $region20: #{tpu_custom_call.1} parent=1 // pred_region
      %70 = dma.done [#allocation4], 256
    $region21: #{tpu_custom_call.1} parent=1 // pred_fallthru
      _
    %71 = vsyncpa [#allocation3], 1
    %72 = vsyncpa [#allocation4], 1

</llo_original>
